<compile_context>
chip_gen: v6e
topology: v6e:2x2x1
jax: 0.10.0
libtpu: 0.0.40
codegen_flags: <defaults>
</compile_context>

<pallas_src>
import functools

import jax
import jax.numpy as jnp
from jax.experimental import pallas as pl
from jax.experimental.pallas import tpu as pltpu


def _round_up(x, m):
    return ((x + m - 1) // m) * m


def _linear_mlp_kernel(x_ref, w1t_ref, b1_ref, w2t_ref, b2_ref, o_ref):
    # fc1: bf16 x @ bf16 W1^T on the MXU, accumulate in f32, f32 bias add on the VPU.
    h = jnp.dot(x_ref[...], w1t_ref[...], preferred_element_type=jnp.float32)
    h = h + b1_ref[...]
    # fc2: back to the compute dtype for the second MXU pass, f32 accumulate + bias.
    h = h.astype(w2t_ref.dtype)
    out = jnp.dot(h, w2t_ref[...], preferred_element_type=jnp.float32)
    out = out + b2_ref[...]
    o_ref[...] = out.astype(o_ref.dtype)


def prepare_params(w1, b1, w2, b2, compute_dtype=jnp.bfloat16):
    """One-time weight preparation (NOT per call):
      - transpose to matmul-friendly layout (In,H) / (H,C)
      - cast matmul operands to bf16 (f32 accumulation happens in-kernel)
      - pad the class dim to a multiple of 128 so the output store is lane-dense
      - biases stay f32 (bias add is done in f32; safe on v5e's non-bf16 VPU)
    """
    H, In = w1.shape
    C, H2 = w2.shape
    assert H2 == H
    Cp = _round_up(C, 128)

    w1t = jnp.asarray(w1, jnp.float32).T.astype(compute_dtype)            # (In, H)
    w2t = jnp.asarray(w2, jnp.float32).T.astype(compute_dtype)            # (H, C)
    w2t_p = jnp.zeros((H, Cp), compute_dtype).at[:, :C].set(w2t)          # (H, Cp)
    b1r = jnp.asarray(b1, jnp.float32).reshape(1, H)                      # (1, H)
    b2p = jnp.zeros((1, Cp), jnp.float32).at[0, :C].set(
        jnp.asarray(b2, jnp.float32))                                     # (1, Cp)

    return {
        "w1t": w1t, "b1": b1r, "w2t": w2t_p, "b2": b2p,
        "num_classes": C,
    }


def linear_forward(text, text_lengths, params):
    """Pallas equivalent of Linear.forward(text, text_lengths).

    text: (batch, input_size) any float/int dtype
    text_lengths: unused (API parity with the PyTorch module)
    params: output of prepare_params()
    returns: (batch, num_classes) float32
    """
    del text_lengths  # unused in the reference forward pass

    w1t, b1, w2t, b2 = params["w1t"], params["b1"], params["w2t"], params["b2"]
    C = params["num_classes"]
    compute_dtype = w1t.dtype
    In, H = w1t.shape
    _, Cp = w2t.shape

    B = text.shape[0]
    # The module does text.float(); we cast to the compute dtype (bf16 by default)
    # so both MXU passes run at native rate; accumulation is still f32.
    x = text.astype(compute_dtype)

    # Batch tiling: TB multiple of 16 (bf16 sublane pack), capped at 256.
    TB = min(256, _round_up(B, 16))
    B_pad = _round_up(B, TB)
    if B_pad != B:
        x = jnp.pad(x, ((0, B_pad - B), (0, 0)))

    grid = (B_pad // TB,)

    out = pl.pallas_call(
        _linear_mlp_kernel,
        out_shape=jax.ShapeDtypeStruct((B_pad, Cp), jnp.float32),
        grid_spec=pltpu.PrefetchScalarGridSpec(
            num_scalar_prefetch=0,
            grid=grid,
            in_specs=[
                # x tiles march along the batch axis (double-buffered by Pallas).
                pl.BlockSpec((TB, In), lambda i: (i, 0)),
                # Weights/biases use a constant block index -> DMA'd once,
                # VMEM-resident across all batch tiles.
                pl.BlockSpec((In, H), lambda i: (0, 0)),
                pl.BlockSpec((1, H), lambda i: (0, 0)),
                pl.BlockSpec((H, Cp), lambda i: (0, 0)),
                pl.BlockSpec((1, Cp), lambda i: (0, 0)),
            ],
            out_specs=pl.BlockSpec((TB, Cp), lambda i: (i, 0)),
        ),
        compiler_params=pltpu.CompilerParams(
            # Batch tiles are independent: "parallel" lets v7x shard them
            # across its 2 TensorCores; neutral on v5e/v6e.
            dimension_semantics=("parallel",),
            # Demo weights are tiny; for production In/H sizes re-derive the
            # VMEM budget (v7x: 64 MiB physical) and raise vmem_limit_bytes
            # or tile the contraction dim with an f32 accumulator.
        ),
    )(x, w1t, b1, w2t, b2)

    return out[:B, :C]


def init_params(key, input_size, hidden_size, num_classes):
    """Deterministic init mimicking nn.Linear defaults (uniform +-1/sqrt(fan_in))."""
    k1, k2, k3, k4 = jax.random.split(key, 4)
    bound1 = 1.0 / (input_size ** 0.5)
    bound2 = 1.0 / (hidden_size ** 0.5)
    w1 = jax.random.uniform(k1, (hidden_size, input_size), jnp.float32, -bound1, bound1)
    b1 = jax.random.uniform(k2, (hidden_size,), jnp.float32, -bound1, bound1)
    w2 = jax.random.uniform(k3, (num_classes, hidden_size), jnp.float32, -bound2, bound2)
    b2 = jax.random.uniform(k4, (num_classes,), jnp.float32, -bound2, bound2)
    return w1, b1, w2, b2


if __name__ == "__main__":
    batch = 8
    input_size = 32
    hidden_size = 64
    num_classes = 16

    key = jax.random.PRNGKey(0)
    k_x, k_p = jax.random.split(key)

    text = jax.random.normal(k_x, (batch, input_size), jnp.float32)
    text_lengths = jnp.full((batch,), input_size, dtype=jnp.int32)  # unused by forward
    w1, b1, w2, b2 = init_params(k_p, input_size, hidden_size, num_classes)

    # One-time weight prep (transpose/cast/pad) — hoisted out of the per-call path.
    params = prepare_params(w1, b1, w2, b2, compute_dtype=jnp.bfloat16)

    preds = linear_forward(text, text_lengths, params)
    preds = jax.block_until_ready(preds)
    assert preds.shape == (batch, num_classes)

    # Reference matching the kernel's numerics (bf16 operands, f32 accumulate/bias).
    xb = text.astype(jnp.bfloat16).astype(jnp.float32)
    h_ref = xb @ params["w1t"].astype(jnp.float32) + params["b1"]
    hb = h_ref.astype(jnp.bfloat16).astype(jnp.float32)
    ref_bf16 = (hb @ params["w2t"].astype(jnp.float32) + params["b2"])[:, :num_classes]
    assert jnp.allclose(preds, ref_bf16, atol=1e-2, rtol=1e-2)

    # Sanity check against the pure-f32 PyTorch-semantics reference (looser tol: bf16 MXU path).
    ref_f32 = (text @ w1.T + b1) @ w2.T + b2
    assert jnp.allclose(preds, ref_f32, atol=1e-1, rtol=1e-1)

    print("KERNEL_OK")
</pallas_src>

<mosaic_0001>
module attributes {stable_mosaic.version = 11 : i64} {
  func.func @_linear_mlp_kernel(%arg0: i32, %arg1: memref<16x32xbf16, #tpu.memory_space<vmem>>, %arg2: memref<32x64xbf16, #tpu.memory_space<vmem>>, %arg3: memref<1x64xf32, #tpu.memory_space<vmem>>, %arg4: memref<64x128xbf16, #tpu.memory_space<vmem>>, %arg5: memref<1x128xf32, #tpu.memory_space<vmem>>, %arg6: memref<16x128xf32, #tpu.memory_space<vmem>>) attributes {dimension_semantics = [#tpu.dimension_semantics<parallel>], iteration_bounds = array<i64: 1>, scalar_prefetch = 0 : i64, scratch_operands = 0 : i64, tpu.core_type = #tpu.core_type<tc>, window_params = [{transform_indices = @transform_0, window_bounds = array<i64: 16, 32>}, {pipeline_mode = #tpu.pipeline_mode<synchronous>, transform_indices = @transform_1, window_bounds = array<i64: 32, 64>}, {pipeline_mode = #tpu.pipeline_mode<synchronous>, transform_indices = @transform_2, window_bounds = array<i64: 1, 64>}, {pipeline_mode = #tpu.pipeline_mode<synchronous>, transform_indices = @transform_3, window_bounds = array<i64: 64, 128>}, {pipeline_mode = #tpu.pipeline_mode<synchronous>, transform_indices = @transform_4, window_bounds = array<i64: 1, 128>}, {transform_indices = @transform_5, window_bounds = array<i64: 16, 128>}]} {
    %c0 = arith.constant 0 : index
    %c0_0 = arith.constant 0 : index
    %0 = vector.load %arg1[%c0, %c0_0] : memref<16x32xbf16, #tpu.memory_space<vmem>>, vector<16x32xbf16>
    %c0_1 = arith.constant 0 : index
    %c0_2 = arith.constant 0 : index
    %1 = vector.load %arg2[%c0_1, %c0_2] : memref<32x64xbf16, #tpu.memory_space<vmem>>, vector<32x64xbf16>
    %cst = arith.constant dense<0.000000e+00> : vector<16x64xf32>
    %2 = tpu.matmul %0, %1, %cst {dimension_numbers = #tpu.dot_dimension_numbers<[1], [0], [0], [1], [0, 0, 1, 1], [], []>} : vector<16x32xbf16>, vector<32x64xbf16>, vector<16x64xf32> -> vector<16x64xf32>
    %c0_3 = arith.constant 0 : index
    %c0_4 = arith.constant 0 : index
    %3 = vector.load %arg3[%c0_3, %c0_4] : memref<1x64xf32, #tpu.memory_space<vmem>>, vector<1x64xf32>
    %4 = vector.broadcast %3 : vector<1x64xf32> to vector<16x64xf32>
    %5 = arith.addf %2, %4 : vector<16x64xf32>
    %6 = arith.truncf %5 : vector<16x64xf32> to vector<16x64xbf16>
    %c0_5 = arith.constant 0 : index
    %c0_6 = arith.constant 0 : index
    %7 = vector.load %arg4[%c0_5, %c0_6] : memref<64x128xbf16, #tpu.memory_space<vmem>>, vector<64x128xbf16>
    %cst_7 = arith.constant dense<0.000000e+00> : vector<16x128xf32>
    %8 = tpu.matmul %6, %7, %cst_7 {dimension_numbers = #tpu.dot_dimension_numbers<[1], [0], [0], [1], [0, 0, 1, 1], [], []>} : vector<16x64xbf16>, vector<64x128xbf16>, vector<16x128xf32> -> vector<16x128xf32>
    %c0_8 = arith.constant 0 : index
    %c0_9 = arith.constant 0 : index
    %9 = vector.load %arg5[%c0_8, %c0_9] : memref<1x128xf32, #tpu.memory_space<vmem>>, vector<1x128xf32>
    %10 = vector.broadcast %9 : vector<1x128xf32> to vector<16x128xf32>
    %11 = arith.addf %8, %10 : vector<16x128xf32>
    %c0_10 = arith.constant 0 : index
    %c0_11 = arith.constant 0 : index
    %12 = vector.load %arg6[%c0_10, %c0_11] : memref<16x128xf32, #tpu.memory_space<vmem>>, vector<16x128xf32>
    tpu.vector_store %arg6[%c0_10, %c0_11], %11 {strides = array<i32>} : memref<16x128xf32, #tpu.memory_space<vmem>>, vector<16x128xf32>,
    return
  }
  func.func @transform_0(%arg0: i32) -> (i32, i32) {
    %c0_i32 = arith.constant 0 : i32
    %c0_i32_0 = arith.constant 0 : i32
    return %arg0, %c0_i32 : i32, i32
  }
  func.func @transform_1(%arg0: i32) -> (i32, i32) {
    %c0_i32 = arith.constant 0 : i32
    %c0_i32_0 = arith.constant 0 : i32
    %c0_i32_1 = arith.constant 0 : i32
    return %c0_i32, %c0_i32_0 : i32, i32
  }
  func.func @transform_2(%arg0: i32) -> (i32, i32) {
    %c0_i32 = arith.constant 0 : i32
    %c0_i32_0 = arith.constant 0 : i32
    %c0_i32_1 = arith.constant 0 : i32
    return %c0_i32, %c0_i32_0 : i32, i32
  }
  func.func @transform_3(%arg0: i32) -> (i32, i32) {
    %c0_i32 = arith.constant 0 : i32
    %c0_i32_0 = arith.constant 0 : i32
    %c0_i32_1 = arith.constant 0 : i32
    return %c0_i32, %c0_i32_0 : i32, i32
  }
  func.func @transform_4(%arg0: i32) -> (i32, i32) {
    %c0_i32 = arith.constant 0 : i32
    %c0_i32_0 = arith.constant 0 : i32
    %c0_i32_1 = arith.constant 0 : i32
    return %c0_i32, %c0_i32_0 : i32, i32
  }
  func.func @transform_5(%arg0: i32) -> (i32, i32) {
    %c0_i32 = arith.constant 0 : i32
    %c0_i32_0 = arith.constant 0 : i32
    return %arg0, %c0_i32 : i32, i32
  }
}

</mosaic_0001>

<llo_original>
// kernel: tpu_custom_call.1
$region0: #{tpu_custom_call.1}
  #allocation0 [shape = 'u32[]', space=smem, size = 0x4, offset = 0x4, fixed_abs, tag = 'smem constant byte address 0x4 - core index']
  #allocation1 [shape = 'u32[144,128]{1,0:T(1,128)}', space=vmem, size = 0x12000, scoped, tag = 'internal scratch']
  %s0 = inlined_call_operand.hbm [shape: bf16[16,32], index: 0, kind: input, shape index: {}]
  %s1 = inlined_call_operand.hbm [shape: bf16[32,64], index: 1, kind: input, shape index: {}]
  %s2 = inlined_call_operand.vmem [shape: f32[1,64], index: 2, kind: input, shape index: {}]
  %s3 = inlined_call_operand.hbm [shape: bf16[64,128], index: 3, kind: input, shape index: {}]
  %s4 = inlined_call_operand.vmem [shape: f32[1,128], index: 4, kind: input, shape index: {}]
  %s5 = inlined_call_operand.hbm [shape: f32[16,128], index: 5, kind: output, shape index: {}]
  %s6 = sld [smem:[#allocation0]]
  $region42: #{tpu_custom_call.1} parent=0
    _
  %s8 = ssub.s32 1, %s6
  %s9 = scalar_select 0, %s8, %s6
  $region1: #{tpu_custom_call.1} parent=0
    #allocation2 [shape = 'u8[4096]{0}', space=vmem, size = 0x1000, scoped, tag = 'input window, operand 0, single buffered']
    #allocation3 [shape = 's32[1]{0}', space=sflag, size = 0x4, scoped, tag = 'scoped memory for tpu_custom_call.1']
    #allocation4 [shape = 's32[1]{0}', space=sflag, size = 0x4, scoped, tag = 'scoped memory for tpu_custom_call.1']
    #allocation5 [shape = 'u8[8192]{0}', space=vmem, size = 0x2000, scoped, tag = 'input window, operand 1, single buffered']
    #allocation6 [shape = 's32[1]{0}', space=sflag, size = 0x4, scoped, tag = 'scoped memory for tpu_custom_call.1']
    #allocation7 [shape = 'u8[16384]{0}', space=vmem, size = 0x4000, scoped, tag = 'input window, operand 3, single buffered']
    #allocation8 [shape = 'u8[8192]{0}', space=vmem, size = 0x2000, scoped, tag = 'output window, operand 0, single buffered']
    %10 = vsyncpa [#allocation3], 0
    %11 = vsyncpa [#allocation6], 0
    %12 = vsyncpa [#allocation4], 0
    // Predicated region
    $region2: #{tpu_custom_call.1} parent=1 // pred_check
      _
    $region3: #{tpu_custom_call.1} parent=1 // pred_check_branch
      %14 = sbr.rel (0) target = $region5
    $region4: #{tpu_custom_call.1} parent=1 // pred_region
      %s16 = ssub.s32 128, 128
      %17 = vsyncadd [#allocation3], %s16
      %s18 = sshll.u32 [#allocation2], 4
      %s19 = int_to_ptr.vmem [resolvable:$true] %s18
      %24 = dma.hbm_to_vmem [thread:$0]  %s0, 128, %s19, [#allocation3], 64, 64, 4
    $region5: #{tpu_custom_call.1} parent=1 // pred_fallthru
      _
    // Predicated region
    $region6: #{tpu_custom_call.1} parent=1 // pred_check
      _
    $region7: #{tpu_custom_call.1} parent=1 // pred_check_branch
      %26 = sbr.rel (0) target = $region9
    $region8: #{tpu_custom_call.1} parent=1 // pred_region
      %s28 = ssub.s32 256, 256
      %29 = vsyncadd [#allocation6], %s28
      %s30 = sshll.u32 [#allocation5], 4
      %s31 = int_to_ptr.vmem [resolvable:$true] %s30
      %36 = dma.hbm_to_vmem [thread:$0]  %s1, 256, %s31, [#allocation6], 64, 64, 4
    $region9: #{tpu_custom_call.1} parent=1 // pred_fallthru
      _
    // Predicated region
    $region10: #{tpu_custom_call.1} parent=1 // pred_check
      _
    $region11: #{tpu_custom_call.1} parent=1 // pred_check_branch
      %38 = sbr.rel (0) target = $region13
    $region12: #{tpu_custom_call.1} parent=1 // pred_region
      _
    $region13: #{tpu_custom_call.1} parent=1 // pred_fallthru
      _
    // Predicated region
    $region14: #{tpu_custom_call.1} parent=1 // pred_check
      _
    $region15: #{tpu_custom_call.1} parent=1 // pred_check_branch
      %40 = sbr.rel (0) target = $region17
    $region16: #{tpu_custom_call.1} parent=1 // pred_region
      %s42 = ssub.s32 512, 512
      %43 = vsyncadd [#allocation6], %s42
      %s44 = sshll.u32 [#allocation7], 4
      %s45 = int_to_ptr.vmem [resolvable:$true] %s44
      %50 = dma.hbm_to_vmem [thread:$0]  %s3, 512, %s45, [#allocation6], 64, 64, 4
    $region17: #{tpu_custom_call.1} parent=1 // pred_fallthru
      _
    // Predicated region
    $region18: #{tpu_custom_call.1} parent=1 // pred_check
      _
    $region19: #{tpu_custom_call.1} parent=1 // pred_check_branch
      %52 = sbr.rel (0) target = $region21
    $region20: #{tpu_custom_call.1} parent=1 // pred_region
      _
    $region21: #{tpu_custom_call.1} parent=1 // pred_fallthru
      _
    // Predicated region
    $region22: #{tpu_custom_call.1} parent=1 // pred_check
      _
    $region23: #{tpu_custom_call.1} parent=1 // pred_check_branch
      %54 = sbr.rel (0) target = $region25
    $region24: #{tpu_custom_call.1} parent=1 // pred_region
      %55 = dma.done [#allocation3], 128
    $region25: #{tpu_custom_call.1} parent=1 // pred_fallthru
      _
    // Predicated region
    $region26: #{tpu_custom_call.1} parent=1 // pred_check
      _
    $region27: #{tpu_custom_call.1} parent=1 // pred_check_branch
      %57 = sbr.rel (0) target = $region29
    $region28: #{tpu_custom_call.1} parent=1 // pred_region
      %58 = dma.done [#allocation6], 256
    $region29: #{tpu_custom_call.1} parent=1 // pred_fallthru
      _
    // Predicated region
    $region30: #{tpu_custom_call.1} parent=1 // pred_check
      _
    $region31: #{tpu_custom_call.1} parent=1 // pred_check_branch
      %60 = sbr.rel (0) target = $region33
    $region32: #{tpu_custom_call.1} parent=1 // pred_region
      %61 = dma.done [#allocation6], 512
    $region33: #{tpu_custom_call.1} parent=1 // pred_fallthru
      _
    %v63 = vld [vmem:[#allocation2] sm:$0xf]
    %v64 = vld [vmem:[#allocation2 + $0x4] sm:$0xf]
    %v65 = vld [vmem:[#allocation5] sm:$0xf]
    %v66 = vld [vmem:[#allocation5 + $0x4] sm:$0xf]
    %v67 = vld [vmem:[#allocation5 + $0x8] sm:$0xf]
    %v68 = vld [vmem:[#allocation5 + $0xc] sm:$0xf]
    %v69 = vld [vmem:[%s2] sm:$0x1]
    %v71 = vlaneseq
    %v72 = vshrl.u32 %v71, 7
    %v73 = vsub.s32 0, %v72
    %v74 = vrot.slane %v69, %v73
    %v78 = vunpack.c.l.b16 %v63
    %v79 = vunpack.c.l.b16 %v64
    %v80 = vpack.c.b16 %v79, %v78
    %v85 = vunpack.c.l.b16 %v65
    %v86 = vunpack.c.l.b16 %v66
    %v87 = vunpack.c.l.b16 %v67
    %v88 = vunpack.c.l.b16 %v68
    %v89 = vpack.c.b16 %v86, %v85
    %v90 = vpack.c.b16 %v88, %v87
    %vm93 = vcmask 261120
    %v95 = vsel %vm93, %v80, 0
    %97 = vmatprep.subr.bf16.mxu0 0
    %98 = vmatpush1.bf16.msra.mxu0 0
    %99 = vmatprep.subr.bf16.mxu0 0
    %100 = vmatpush1.bf16.msra.mxu0 0
    %101 = vmatprep.subr.bf16.mxu0 0
    %102 = vmatpush1.bf16.msra.mxu0 0
    %103 = vmatprep.subr.bf16.mxu0 0
    %104 = vmatpush1.bf16.msra.mxu0 0
    %105 = vmatprep.subr.bf16.mxu0 0
    %106 = vmatpush1.bf16.msra.mxu0 0
    %107 = vmatprep.subr.bf16.mxu0 0
    %108 = vmatpush1.bf16.msra.mxu0 0
    %109 = vmatprep.subr.bf16.mxu0 0
    %110 = vmatpush1.bf16.msra.mxu0 %v90
    %111 = vmatprep.subr.bf16.mxu0 0
    %112 = vmatpush1.bf16.msra.mxu0 %v89
    %113 = vmatprep.subr.bf16.mxu0 0
    %114 = vmatpush2.bf16.msra.mxu0 0
    %115 = vmatprep.subr.bf16.mxu0 0
    %116 = vmatpush2.bf16.msra.mxu0 0
    %117 = vmatprep.subr.bf16.mxu0 0
    %118 = vmatpush2.bf16.msra.mxu0 0
    %119 = vmatprep.subr.bf16.mxu0 0
    %120 = vmatpush2.bf16.msra.mxu0 0
    %121 = vmatprep.subr.bf16.mxu0 0
    %122 = vmatpush2.bf16.msra.mxu0 0
    %123 = vmatprep.subr.bf16.mxu0 0
    %124 = vmatpush2.bf16.msra.mxu0 0
    %125 = vmatprep.subr.bf16.mxu0 0
    %126 = vmatpush2.bf16.msra.mxu0 0
    %127 = vmatprep.subr.bf16.mxu0 0
    %128 = vmatpush2.bf16.msra.mxu0 0
    %129 = vmatprep.mubr.bf16.mxu0 0
    %130 = vmatmul.mubr.bf16.gmra.mxu0 %v95
    %v131 = vpop.f32.mrf.mxu0
    %v132 = vadd.f32 %v74, %v131
    %v133 = vpop.f32.mrf.mxu0
    %v134 = vpop.f32.mrf.mxu0
    %v135 = vadd.f32 %v74, %v134
    %v136 = vpop.f32.mrf.mxu0
    %137 = vdwg.mxu0
    %v138 = vpack.c.bf16 %v135, %v132
    %v139 = vld [vmem:[#allocation7] sm:$0xf]
    %v140 = vld [vmem:[#allocation7 + $0x4] sm:$0xf]
    %v141 = vld [vmem:[#allocation7 + $0x8] sm:$0xf]
    %v142 = vld [vmem:[#allocation7 + $0xc] sm:$0xf]
    %v143 = vld [vmem:[#allocation7 + $0x10] sm:$0xf]
    %v144 = vld [vmem:[#allocation7 + $0x14] sm:$0xf]
    %v145 = vld [vmem:[#allocation7 + $0x18] sm:$0xf]
    %v146 = vld [vmem:[#allocation7 + $0x1c] sm:$0xf]
    %v147 = vld [vmem:[%s4] sm:$0x1]
    %v149 = vlaneseq
    %v150 = vshrl.u32 %v149, 7
    %v151 = vsub.s32 0, %v150
    %v152 = vrot.slane %v147, %v151
    %v162 = vunpack.c.l.b16 %v139
    %v163 = vunpack.c.l.b16 %v140
    %v164 = vunpack.c.l.b16 %v141
    %v165 = vunpack.c.l.b16 %v142
    %v166 = vunpack.c.l.b16 %v143
    %v167 = vunpack.c.l.b16 %v144
    %v168 = vunpack.c.l.b16 %v145
    %v169 = vunpack.c.l.b16 %v146
    %v170 = vpack.c.b16 %v163, %v162
    %v171 = vpack.c.b16 %v165, %v164
    %v172 = vpack.c.b16 %v167, %v166
    %v173 = vpack.c.b16 %v169, %v168
    %vm178 = vcmask 523264
    %v180 = vsel %vm178, %v138, 0
    %182 = vmatprep.subr.bf16.mxu0 0
    %183 = vmatpush1.bf16.msra.mxu0 0
    %184 = vmatprep.subr.bf16.mxu0 0
    %185 = vmatpush1.bf16.msra.mxu0 0
    %186 = vmatprep.subr.bf16.mxu0 0
    %187 = vmatpush1.bf16.msra.mxu0 0
    %188 = vmatprep.subr.bf16.mxu0 0
    %189 = vmatpush1.bf16.msra.mxu0 0
    %190 = vmatprep.subr.bf16.mxu0 0
    %191 = vmatpush1.bf16.msra.mxu0 %v173
    %192 = vmatprep.subr.bf16.mxu0 0
    %193 = vmatpush1.bf16.msra.mxu0 %v172
    %194 = vmatprep.subr.bf16.mxu0 0
    %195 = vmatpush1.bf16.msra.mxu0 %v171
    %196 = vmatprep.subr.bf16.mxu0 0
    %197 = vmatpush1.bf16.msra.mxu0 %v170
    %198 = vmatprep.subr.bf16.mxu0 0
    %199 = vmatpush2.bf16.msra.mxu0 0
    %200 = vmatprep.subr.bf16.mxu0 0
    %201 = vmatpush2.bf16.msra.mxu0 0
    %202 = vmatprep.subr.bf16.mxu0 0
    %203 = vmatpush2.bf16.msra.mxu0 0
    %204 = vmatprep.subr.bf16.mxu0 0
    %205 = vmatpush2.bf16.msra.mxu0 0
    %206 = vmatprep.subr.bf16.mxu0 0
    %207 = vmatpush2.bf16.msra.mxu0 0
    %208 = vmatprep.subr.bf16.mxu0 0
    %209 = vmatpush2.bf16.msra.mxu0 0
    %210 = vmatprep.subr.bf16.mxu0 0
    %211 = vmatpush2.bf16.msra.mxu0 0
    %212 = vmatprep.subr.bf16.mxu0 0
    %213 = vmatpush2.bf16.msra.mxu0 0
    %214 = vmatprep.mubr.bf16.mxu0 0
    %215 = vmatmul.mubr.bf16.gmra.mxu0 %v180
    %v216 = vpop.f32.mrf.mxu0
    %v217 = vadd.f32 %v152, %v216
    %v218 = vpop.f32.mrf.mxu0
    %v219 = vpop.f32.mrf.mxu0
    %v220 = vadd.f32 %v152, %v219
    %v221 = vpop.f32.mrf.mxu0
    %222 = vdwg.mxu0
    %223 = vst [vmem:[#allocation8] sm:$0xff] %v217
    %224 = vst [vmem:[#allocation8 + $0x8] sm:$0xff] %v220
    // Predicated region
    $region34: #{tpu_custom_call.1} parent=1 // pred_check
      _
    $region35: #{tpu_custom_call.1} parent=1 // pred_check_branch
      %226 = sbr.rel (0) target = $region37
    $region36: #{tpu_custom_call.1} parent=1 // pred_region
      %s228 = ssub.s32 256, 256
      %229 = vsyncadd [#allocation4], %s228
      %s230 = sshll.u32 [#allocation8], 4
      %s231 = int_to_ptr.vmem [resolvable:$true] %s230
      %236 = dma.vmem_to_hbm [thread:$0]  %s231, 256, %s5, [#allocation4], 128, 128, 8
    $region37: #{tpu_custom_call.1} parent=1 // pred_fallthru
      _
    // Predicated region
    $region38: #{tpu_custom_call.1} parent=1 // pred_check
      _
    $region39: #{tpu_custom_call.1} parent=1 // pred_check_branch
      %238 = sbr.rel (0) target = $region41
    $region40: #{tpu_custom_call.1} parent=1 // pred_region
      %239 = dma.done [#allocation4], 256
    $region41: #{tpu_custom_call.1} parent=1 // pred_fallthru
      _
    %240 = vsyncpa [#allocation3], 1
    %241 = vsyncpa [#allocation6], 1
    %242 = vsyncpa [#allocation4], 1

</llo_original>
